<compile_context>
chip_gen: v7x
topology: tpu7x:2x2x1
jax: 0.10.0
libtpu: 0.0.40
codegen_flags: <defaults>
</compile_context>

<pallas_src>
import jax
import jax.numpy as jnp
from jax.experimental import pallas as pl
from jax.experimental.pallas import tpu as pltpu


def _flatnet_kernel(x_ref, w_ref, b_ref, o_ref):
    # MXU matmul with f32 accumulate + VPU bias add, all inside the kernel.
    acc = jnp.dot(x_ref[...], w_ref[...], preferred_element_type=jnp.float32)
    acc = acc + b_ref[...]                      # (TM, N) + (1, N) broadcast
    o_ref[...] = acc.astype(o_ref.dtype)


def _round_up(v, m):
    return ((v + m - 1) // m) * m


def init_flatnet_params(key, d_inputs, d_outputs, dtype=jnp.float32):
    """Deterministic init matching FlatNet.__init__:
       - weight: kaiming_normal_(mode='fan_in') -> N(0, sqrt(2/fan_in))
       - bias:   nn.Linear default -> U(-1/sqrt(fan_in), 1/sqrt(fan_in))
    Returns weight in PyTorch layout (d_out, d_in)."""
    kw, kb = jax.random.split(key)
    std = (2.0 / d_inputs) ** 0.5
    weight = std * jax.random.normal(kw, (d_outputs, d_inputs), dtype=dtype)
    bound = 1.0 / (d_inputs ** 0.5)
    bias = jax.random.uniform(kb, (d_outputs,), dtype=dtype,
                              minval=-bound, maxval=bound)
    return weight, bias


def prepare_flatnet_params(weight, bias, *, lane_width=128):
    """One-time parameter prep, hoisted out of the per-forward path.

    weight: (d_out, d_in) PyTorch nn.Linear layout; bias: (d_out,).
    Returns (w_packed, b_packed, fold) where
      fold      = lane_width // d_out  (1 if d_out does not divide lane_width)
      w_packed  = block-diagonal (fold*d_in, fold*d_out) with `fold` copies of W.T
      b_packed  = (1, fold*d_out) = bias tiled `fold` times
    """
    d_out, d_in = weight.shape
    weight_t = weight.T                                         # (d_in, d_out)
    if d_out < lane_width and lane_width % d_out == 0:
        fold = lane_width // d_out
    else:
        fold = 1
    if fold == 1:
        w_packed = weight_t
        b_packed = bias.reshape(1, d_out)
    else:
        eye = jnp.eye(fold, dtype=weight.dtype)
        # w_packed[f*d_in + i, g*d_out + j] = W.T[i, j] if f == g else 0
        w_packed = jnp.einsum("fg,ij->figj", eye, weight_t).reshape(
            fold * d_in, fold * d_out)
        b_packed = jnp.tile(bias.reshape(1, d_out), (1, fold))  # (1, fold*d_out)
    return w_packed, b_packed, fold


def flatnet_forward(x, w_packed, b_packed, fold, *, tm=8192, min_grid_steps=2):
    """Forward pass of FlatNet (lane-dense folded linear layer).

    x:        (B, d_in)                      f32
    w_packed: (fold*d_in, fold*d_out)        f32  (from prepare_flatnet_params)
    b_packed: (1, fold*d_out)                f32
    returns:  (B, d_out)                     f32
    """
    B, d_in = x.shape
    K, N = w_packed.shape
    assert K == fold * d_in, "w_packed does not match x / fold"
    d_out = N // fold

    # Pad the batch to a multiple of the fold factor with zero rows (sliced off
    # at the end), then view as folded rows — a free row-major reshape.
    B_pad = _round_up(B, fold)
    if B_pad != B:
        x = jnp.pad(x, ((0, B_pad - B), (0, 0)))
    rows = B_pad // fold
    x_f = x.reshape(rows, K)

    itemsize = jnp.dtype(x.dtype).itemsize
    w_itemsize = jnp.dtype(w_packed.dtype).itemsize

    # --- batch tile size (in folded rows) ---
    tm_f = max(8, (tm // fold) // 8 * 8)
    if rows >= 2 * 8:
        # Keep >= min_grid_steps grid steps so v7x megacore sharding and the
        # software pipeline (prefetch i+1 / writeback i-1) are engaged.
        tm_f = min(tm_f, max(8, _round_up(pl.cdiv(rows, min_grid_steps), 8)))
    # VMEM clamp: double-buffered x+out tiles plus the resident weight/bias must
    # fit comfortably on v5e (16 MiB scoped default) / v6e / v7x (64 MiB physical).
    resident_bytes = (K * N + N) * w_itemsize
    tile_budget = 12 * 1024 * 1024
    while tm_f > 8 and 2 * tm_f * (K + N) * itemsize + resident_bytes > tile_budget:
        tm_f = max(8, (tm_f // 2) // 8 * 8)
    tm_eff = rows if rows <= tm_f else tm_f
    grid = (pl.cdiv(rows, tm_eff),)

    cost = pl.CostEstimate(
        flops=2 * rows * K * N,
        transcendentals=0,
        bytes_accessed=itemsize * (rows * K + rows * N) + w_itemsize * (K * N + N),
    )

    out_f = pl.pallas_call(
        _flatnet_kernel,
        out_shape=jax.ShapeDtypeStruct((rows, N), x.dtype),
        grid_spec=pltpu.PrefetchScalarGridSpec(
            num_scalar_prefetch=0,
            grid=grid,
            in_specs=[
                # x: streamed, double-buffered over the batch grid (lane-dense K).
                pl.BlockSpec((tm_eff, K), lambda i: (i, 0)),
                # weight / bias: same block every step -> VMEM-resident.
                pl.BlockSpec((K, N), lambda i: (0, 0)),
                pl.BlockSpec((1, N), lambda i: (0, 0)),
            ],
            # lane-dense output (N = 128 after folding -> unmasked full-vreg stores).
            out_specs=pl.BlockSpec((tm_eff, N), lambda i: (i, 0)),
        ),
        compiler_params=pltpu.CompilerParams(
            # No reduction axis in the grid -> parallel (megacore sharding on v7x).
            dimension_semantics=("parallel",),
            vmem_limit_bytes=32 * 1024 * 1024,
        ),
        cost_estimate=cost,
    )(x_f, w_packed, b_packed)

    out = out_f.reshape(B_pad, d_out)            # free view back to (B_pad, d_out)
    return out[:B] if B_pad != B else out


if __name__ == "__main__":
    key = jax.random.PRNGKey(0)
    k_x, k_p = jax.random.split(key)

    B, d_inputs, d_outputs = 64, 32, 16
    x = jax.random.normal(k_x, (B, d_inputs), dtype=jnp.float32)
    weight, bias = init_flatnet_params(k_p, d_inputs, d_outputs)

    # One-time param prep (transpose + block-diagonal lane-dense fold), hoisted
    # out of the per-forward path.
    w_packed, b_packed, fold = prepare_flatnet_params(weight, bias)

    # Default path (folded, lane-dense, single grid step at this tiny batch).
    out = jax.block_until_ready(flatnet_forward(x, w_packed, b_packed, fold))
    ref = x @ weight.T + bias
    assert out.shape == (B, d_outputs)
    assert jnp.allclose(out, ref, atol=1e-5, rtol=1e-5)

    # Multi-step batch grid with a partial last folded tile (exercises the
    # software pipeline and output clipping).
    B2 = 72
    x2 = jax.random.normal(jax.random.PRNGKey(1), (B2, d_inputs), dtype=jnp.float32)
    out2 = jax.block_until_ready(flatnet_forward(x2, w_packed, b_packed, fold, tm=16))
    ref2 = x2 @ weight.T + bias
    assert out2.shape == (B2, d_outputs)
    assert jnp.allclose(out2, ref2, atol=1e-5, rtol=1e-5)

    # Fallback path (d_out does not divide the 128-lane width -> fold == 1).
    B3, d_in3, d_out3 = 24, 7, 5
    w3, b3 = init_flatnet_params(jax.random.PRNGKey(2), d_in3, d_out3)
    x3 = jax.random.normal(jax.random.PRNGKey(3), (B3, d_in3), dtype=jnp.float32)
    w3p, b3p, fold3 = prepare_flatnet_params(w3, b3)
    out3 = jax.block_until_ready(flatnet_forward(x3, w3p, b3p, fold3))
    ref3 = x3 @ w3.T + b3
    assert out3.shape == (B3, d_out3)
    assert jnp.allclose(out3, ref3, atol=1e-5, rtol=1e-5)

    print("KERNEL_OK")
</pallas_src>

<mosaic_0001>
module attributes {stable_mosaic.version = 11 : i64} {
  func.func @_flatnet_kernel(%arg0: i32, %arg1: memref<8x256xf32, #tpu.memory_space<vmem>>, %arg2: memref<256x128xf32, #tpu.memory_space<vmem>>, %arg3: memref<1x128xf32, #tpu.memory_space<vmem>>, %arg4: memref<8x128xf32, #tpu.memory_space<vmem>>) attributes {dimension_semantics = [#tpu.dimension_semantics<parallel>], iteration_bounds = array<i64: 1>, scalar_prefetch = 0 : i64, scratch_operands = 0 : i64, tpu.core_type = #tpu.core_type<tc>, window_params = [{transform_indices = @transform_0, window_bounds = array<i64: 8, 256>}, {pipeline_mode = #tpu.pipeline_mode<synchronous>, transform_indices = @transform_1, window_bounds = array<i64: 256, 128>}, {pipeline_mode = #tpu.pipeline_mode<synchronous>, transform_indices = @transform_2, window_bounds = array<i64: 1, 128>}, {transform_indices = @transform_3, window_bounds = array<i64: 8, 128>}]} {
    %c0 = arith.constant 0 : index
    %c0_0 = arith.constant 0 : index
    %0 = vector.load %arg1[%c0, %c0_0] : memref<8x256xf32, #tpu.memory_space<vmem>>, vector<8x256xf32>
    %c0_1 = arith.constant 0 : index
    %c0_2 = arith.constant 0 : index
    %1 = vector.load %arg2[%c0_1, %c0_2] : memref<256x128xf32, #tpu.memory_space<vmem>>, vector<256x128xf32>
    %cst = arith.constant dense<0.000000e+00> : vector<8x128xf32>
    %2 = tpu.matmul %0, %1, %cst {dimension_numbers = #tpu.dot_dimension_numbers<[1], [0], [0], [1], [0, 0, 1, 1], [], []>} : vector<8x256xf32>, vector<256x128xf32>, vector<8x128xf32> -> vector<8x128xf32>
    %c0_3 = arith.constant 0 : index
    %c0_4 = arith.constant 0 : index
    %3 = vector.load %arg3[%c0_3, %c0_4] : memref<1x128xf32, #tpu.memory_space<vmem>>, vector<1x128xf32>
    %4 = vector.broadcast %3 : vector<1x128xf32> to vector<8x128xf32>
    %5 = arith.addf %2, %4 : vector<8x128xf32>
    %c0_5 = arith.constant 0 : index
    %c0_6 = arith.constant 0 : index
    %6 = vector.load %arg4[%c0_5, %c0_6] : memref<8x128xf32, #tpu.memory_space<vmem>>, vector<8x128xf32>
    tpu.vector_store %arg4[%c0_5, %c0_6], %5 {strides = array<i32>} : memref<8x128xf32, #tpu.memory_space<vmem>>, vector<8x128xf32>,
    return
  }
  func.func @transform_0(%arg0: i32) -> (i32, i32) {
    %c0_i32 = arith.constant 0 : i32
    %c0_i32_0 = arith.constant 0 : i32
    return %arg0, %c0_i32 : i32, i32
  }
  func.func @transform_1(%arg0: i32) -> (i32, i32) {
    %c0_i32 = arith.constant 0 : i32
    %c0_i32_0 = arith.constant 0 : i32
    %c0_i32_1 = arith.constant 0 : i32
    return %c0_i32, %c0_i32_0 : i32, i32
  }
  func.func @transform_2(%arg0: i32) -> (i32, i32) {
    %c0_i32 = arith.constant 0 : i32
    %c0_i32_0 = arith.constant 0 : i32
    %c0_i32_1 = arith.constant 0 : i32
    return %c0_i32, %c0_i32_0 : i32, i32
  }
  func.func @transform_3(%arg0: i32) -> (i32, i32) {
    %c0_i32 = arith.constant 0 : i32
    %c0_i32_0 = arith.constant 0 : i32
    return %arg0, %c0_i32 : i32, i32
  }
}

</mosaic_0001>

<llo_original>
// kernel: tpu_custom_call.1
$region0: #{tpu_custom_call.1}
  #allocation0 [shape = 'u32[]', space=smem, size = 0x4, offset = 0x4, fixed_abs, tag = 'smem constant byte address 0x4 - core index']
  #allocation1 [shape = 'u32[144,128]{1,0:T(1,128)}', space=vmem, size = 0x12000, scoped, tag = 'internal scratch']
  %s0 = inlined_call_operand.hbm [shape: f32[8,256], index: 0, kind: input, shape index: {}]
  %s1 = inlined_call_operand.hbm [shape: f32[256,128], index: 1, kind: input, shape index: {}]
  %s2 = inlined_call_operand.vmem [shape: f32[1,128], index: 2, kind: input, shape index: {}]
  %s3 = inlined_call_operand.hbm [shape: f32[8,128], index: 3, kind: output, shape index: {}]
  %s4 = sld [smem:[#allocation0]]
  $region30: #{tpu_custom_call.1} parent=0
    _
  %s6 = ssub.s32 1, %s4
  %s7 = scalar_select 0, %s6, %s4
  $region1: #{tpu_custom_call.1} parent=0
    #allocation2 [shape = 'u8[8192]{0}', space=vmem, size = 0x2000, scoped, tag = 'input window, operand 0, single buffered']
    #allocation3 [shape = 's32[1]{0}', space=sflag, size = 0x4, scoped, tag = 'scoped memory for tpu_custom_call.1']
    #allocation4 [shape = 's32[1]{0}', space=sflag, size = 0x4, scoped, tag = 'scoped memory for tpu_custom_call.1']
    #allocation5 [shape = 'u8[131072]{0}', space=vmem, size = 0x20000, scoped, tag = 'input window, operand 1, single buffered']
    #allocation6 [shape = 's32[1]{0}', space=sflag, size = 0x4, scoped, tag = 'scoped memory for tpu_custom_call.1']
    #allocation7 [shape = 'u8[4096]{0}', space=vmem, size = 0x1000, scoped, tag = 'output window, operand 0, single buffered']
    %8 = vsyncpa [#allocation3], 0
    %9 = vsyncpa [#allocation6], 0
    %10 = vsyncpa [#allocation4], 0
    // Predicated region
    $region2: #{tpu_custom_call.1} parent=1 // pred_check
      _
    $region3: #{tpu_custom_call.1} parent=1 // pred_check_branch
      %12 = sbr.rel (0) target = $region5
    $region4: #{tpu_custom_call.1} parent=1 // pred_region
      %s14 = ssub.s32 256, 256
      %15 = vsyncadd [#allocation3], %s14
      %s17 = sshll.u32 [#allocation2], 4
      %s18 = int_to_ptr.vmem [resolvable:$true] %s17
      %20 = dma.hbm_to_vmem [thread:$0]  %s0, 256, %s18, [#allocation3]
    $region5: #{tpu_custom_call.1} parent=1 // pred_fallthru
      _
    // Predicated region
    $region6: #{tpu_custom_call.1} parent=1 // pred_check
      _
    $region7: #{tpu_custom_call.1} parent=1 // pred_check_branch
      %22 = sbr.rel (0) target = $region9
    $region8: #{tpu_custom_call.1} parent=1 // pred_region
      %s24 = ssub.s32 4096, 4096
      %25 = vsyncadd [#allocation6], %s24
      %s26 = sshll.u32 [#allocation5], 4
      %s27 = int_to_ptr.vmem [resolvable:$true] %s26
      %32 = dma.hbm_to_vmem [thread:$0]  %s1, 4096, %s27, [#allocation6], 128, 128, 8
    $region9: #{tpu_custom_call.1} parent=1 // pred_fallthru
      _
    // Predicated region
    $region10: #{tpu_custom_call.1} parent=1 // pred_check
      _
    $region11: #{tpu_custom_call.1} parent=1 // pred_check_branch
      %34 = sbr.rel (0) target = $region13
    $region12: #{tpu_custom_call.1} parent=1 // pred_region
      _
    $region13: #{tpu_custom_call.1} parent=1 // pred_fallthru
      _
    // Predicated region
    $region14: #{tpu_custom_call.1} parent=1 // pred_check
      _
    $region15: #{tpu_custom_call.1} parent=1 // pred_check_branch
      %36 = sbr.rel (0) target = $region17
    $region16: #{tpu_custom_call.1} parent=1 // pred_region
      %37 = dma.done [#allocation3], 256
    $region17: #{tpu_custom_call.1} parent=1 // pred_fallthru
      _
    // Predicated region
    $region18: #{tpu_custom_call.1} parent=1 // pred_check
      _
    $region19: #{tpu_custom_call.1} parent=1 // pred_check_branch
      %39 = sbr.rel (0) target = $region21
    $region20: #{tpu_custom_call.1} parent=1 // pred_region
      %40 = dma.done [#allocation6], 4096
    $region21: #{tpu_custom_call.1} parent=1 // pred_fallthru
      _
    %v41 = vld [vmem:[#allocation2] sm:$0xff]
    %v42 = vld [vmem:[#allocation2 + $0x8] sm:$0xff]
    %v43 = vld [vmem:[#allocation5] sm:$0xff]
    %v44 = vld [vmem:[#allocation5 + $0x8] sm:$0xff]
    %v45 = vld [vmem:[#allocation5 + $0x10] sm:$0xff]
    %v46 = vld [vmem:[#allocation5 + $0x18] sm:$0xff]
    %v47 = vld [vmem:[#allocation5 + $0x20] sm:$0xff]
    %v48 = vld [vmem:[#allocation5 + $0x28] sm:$0xff]
    %v49 = vld [vmem:[#allocation5 + $0x30] sm:$0xff]
    %v50 = vld [vmem:[#allocation5 + $0x38] sm:$0xff]
    %v51 = vld [vmem:[#allocation5 + $0x40] sm:$0xff]
    %v52 = vld [vmem:[#allocation5 + $0x48] sm:$0xff]
    %v53 = vld [vmem:[#allocation5 + $0x50] sm:$0xff]
    %v54 = vld [vmem:[#allocation5 + $0x58] sm:$0xff]
    %v55 = vld [vmem:[#allocation5 + $0x60] sm:$0xff]
    %v56 = vld [vmem:[#allocation5 + $0x68] sm:$0xff]
    %v57 = vld [vmem:[#allocation5 + $0x70] sm:$0xff]
    %v58 = vld [vmem:[#allocation5 + $0x78] sm:$0xff]
    %v59 = vld [vmem:[#allocation5 + $0x80] sm:$0xff]
    %v60 = vld [vmem:[#allocation5 + $0x88] sm:$0xff]
    %v61 = vld [vmem:[#allocation5 + $0x90] sm:$0xff]
    %v62 = vld [vmem:[#allocation5 + $0x98] sm:$0xff]
    %v63 = vld [vmem:[#allocation5 + $0xa0] sm:$0xff]
    %v64 = vld [vmem:[#allocation5 + $0xa8] sm:$0xff]
    %v65 = vld [vmem:[#allocation5 + $0xb0] sm:$0xff]
    %v66 = vld [vmem:[#allocation5 + $0xb8] sm:$0xff]
    %v67 = vld [vmem:[#allocation5 + $0xc0] sm:$0xff]
    %v68 = vld [vmem:[#allocation5 + $0xc8] sm:$0xff]
    %v69 = vld [vmem:[#allocation5 + $0xd0] sm:$0xff]
    %v70 = vld [vmem:[#allocation5 + $0xd8] sm:$0xff]
    %v71 = vld [vmem:[#allocation5 + $0xe0] sm:$0xff]
    %v72 = vld [vmem:[#allocation5 + $0xe8] sm:$0xff]
    %v73 = vld [vmem:[#allocation5 + $0xf0] sm:$0xff]
    %v74 = vld [vmem:[#allocation5 + $0xf8] sm:$0xff]
    %v75 = vld [vmem:[%s2] sm:$0x1]
    %v77 = vlaneseq
    %v78 = vshrl.u32 %v77, 7
    %v79 = vsub.s32 0, %v78
    %v80 = vrot.slane %v75, %v79
    %82 = vmatprep.subr.mxu0 0.0
    %83 = vmatpush1.msra.mxu0 %v43
    %84 = vmatprep.subr.mxu0 0.0
    %85 = vmatpush1.msra.mxu0 %v44
    %86 = vmatprep.subr.mxu0 0.0
    %87 = vmatpush1.msra.mxu0 %v45
    %88 = vmatprep.subr.mxu0 0.0
    %89 = vmatpush1.msra.mxu0 %v46
    %90 = vmatprep.subr.mxu0 0.0
    %91 = vmatpush1.msra.mxu0 %v47
    %92 = vmatprep.subr.mxu0 0.0
    %93 = vmatpush1.msra.mxu0 %v48
    %94 = vmatprep.subr.mxu0 0.0
    %95 = vmatpush1.msra.mxu0 %v49
    %96 = vmatprep.subr.mxu0 0.0
    %97 = vmatpush1.msra.mxu0 %v50
    %98 = vmatprep.subr.mxu0 0.0
    %99 = vmatpush1.msra.mxu0 %v51
    %100 = vmatprep.subr.mxu0 0.0
    %101 = vmatpush1.msra.mxu0 %v52
    %102 = vmatprep.subr.mxu0 0.0
    %103 = vmatpush1.msra.mxu0 %v53
    %104 = vmatprep.subr.mxu0 0.0
    %105 = vmatpush1.msra.mxu0 %v54
    %106 = vmatprep.subr.mxu0 0.0
    %107 = vmatpush1.msra.mxu0 %v55
    %108 = vmatprep.subr.mxu0 0.0
    %109 = vmatpush1.msra.mxu0 %v56
    %110 = vmatprep.subr.mxu0 0.0
    %111 = vmatpush1.msra.mxu0 %v57
    %112 = vmatprep.subr.mxu0 0.0
    %113 = vmatpush1.msra.mxu0 %v58
    %114 = vmatprep.subr.mxu0 0.0
    %115 = vmatpush1.msra.mxu0 %v59
    %116 = vmatprep.subr.mxu0 0.0
    %117 = vmatpush1.msra.mxu0 %v60
    %118 = vmatprep.subr.mxu0 0.0
    %119 = vmatpush1.msra.mxu0 %v61
    %120 = vmatprep.subr.mxu0 0.0
    %121 = vmatpush1.msra.mxu0 %v62
    %122 = vmatprep.subr.mxu0 0.0
    %123 = vmatpush1.msra.mxu0 %v63
    %124 = vmatprep.subr.mxu0 0.0
    %125 = vmatpush1.msra.mxu0 %v64
    %126 = vmatprep.subr.mxu0 0.0
    %127 = vmatpush1.msra.mxu0 %v65
    %128 = vmatprep.subr.mxu0 0.0
    %129 = vmatpush1.msra.mxu0 %v66
    %130 = vmatprep.subr.mxu0 0.0
    %131 = vmatpush1.msra.mxu0 %v67
    %132 = vmatprep.subr.mxu0 0.0
    %133 = vmatpush1.msra.mxu0 %v68
    %134 = vmatprep.subr.mxu0 0.0
    %135 = vmatpush1.msra.mxu0 %v69
    %136 = vmatprep.subr.mxu0 0.0
    %137 = vmatpush1.msra.mxu0 %v70
    %138 = vmatprep.subr.mxu0 0.0
    %139 = vmatpush1.msra.mxu0 %v71
    %140 = vmatprep.subr.mxu0 0.0
    %141 = vmatpush1.msra.mxu0 %v72
    %142 = vmatprep.subr.mxu0 0.0
    %143 = vmatpush1.msra.mxu0 %v73
    %144 = vmatprep.subr.mxu0 0.0
    %145 = vmatpush1.msra.mxu0 %v74
    %146 = vmatprep.mubr.f32.mxu0 %v42
    %147 = vmatmul.mubr.f32.gmra.mrb[0].mxu0 %v41
    %v148 = vpop.f32.mrb[0].mxu0
    %v149 = vadd.f32 %v80, %v148
    %v150 = vpop.f32.mrb[0].mxu0
    %151 = vdwg.mxu0
    %152 = vst [vmem:[#allocation7] sm:$0xff] %v149
    // Predicated region
    $region22: #{tpu_custom_call.1} parent=1 // pred_check
      _
    $region23: #{tpu_custom_call.1} parent=1 // pred_check_branch
      %154 = sbr.rel (0) target = $region25
    $region24: #{tpu_custom_call.1} parent=1 // pred_region
      %s156 = ssub.s32 128, 128
      %157 = vsyncadd [#allocation4], %s156
      %s159 = sshll.u32 [#allocation7], 4
      %s160 = int_to_ptr.vmem [resolvable:$true] %s159
      %162 = dma.vmem_to_hbm [thread:$0]  %s160, 128, %s3, [#allocation4]
    $region25: #{tpu_custom_call.1} parent=1 // pred_fallthru
      _
    // Predicated region
    $region26: #{tpu_custom_call.1} parent=1 // pred_check
      _
    $region27: #{tpu_custom_call.1} parent=1 // pred_check_branch
      %164 = sbr.rel (0) target = $region29
    $region28: #{tpu_custom_call.1} parent=1 // pred_region
      %165 = dma.done [#allocation4], 128
    $region29: #{tpu_custom_call.1} parent=1 // pred_fallthru
      _
    %166 = vsyncpa [#allocation3], 1
    %167 = vsyncpa [#allocation6], 1
    %168 = vsyncpa [#allocation4], 1

</llo_original>
